<compile_context>
chip_gen: v5e
topology: v5e:2x2
jax: 0.10.0
libtpu: 0.0.40
codegen_flags: <defaults>
</compile_context>

<pallas_src>
import functools

import jax
import jax.numpy as jnp
from jax import lax
from jax.experimental import pallas as pl
from jax.experimental.pallas import tpu as pltpu


# --------------------------------------------------------------------------
# Tiling heuristics (generation-aware)
# --------------------------------------------------------------------------
def _vmem_budget_bytes() -> int:
    """Usable VMEM budget: ~75% of physical, capped at ~100 MiB."""
    cap = 64 << 20
    try:
        info = pltpu.get_tpu_info()
        cap = int(getattr(info, "vmem_capacity_bytes", cap))
    except Exception:
        pass
    return int(min(int(cap * 0.75), 100 << 20))


def _pick_f_tile(F: int) -> int:
    """Feature tile: multiple of 128 (lane width), <= 512.

    Prefers an even number of roughly equal tiles (balances the two v7x
    TensorCores) and >= 4 grid steps for large F (keeps per-core DMA
    pipelining), while minimizing padding waste.
    """
    if F <= 128:
        return F if F < 128 else 128
    best_key, best_t = None, 128
    for t in (512, 384, 256, 128):
        n = -(-F // t)                              # cdiv
        key = (n % 2 != 0,                          # odd tile count -> core imbalance
               (F >= 512) and (n < 4),              # too few steps to pipeline
               n * t - F,                           # padding waste
               -t)                                  # prefer wider tiles
        if best_key is None or key < best_key:
            best_key, best_t = key, t
    return best_t


def _pick_row_block(N: int, f_tile: int, budget: int) -> int:
    """Rows per block: 2 streams x 2 pipeline buffers plus the compiler's
    (ROW_BLK, F_TILE)-sized temporaries stay well inside `budget`."""
    target_bytes = max(256 << 10, min(budget // 32, 2 << 20))
    rb = (target_bytes // (f_tile * 4) // 8) * 8
    rb = max(8, rb)
    return N if rb >= N else rb


# --------------------------------------------------------------------------
# Pass 1: per-column min / max
# --------------------------------------------------------------------------
def _minmax_kernel(a_ref, b_ref, mn_a_ref, mx_a_ref, mn_b_ref, mx_b_ref, *,
                   n_rows, row_blk, mask_rows):
    r = pl.program_id(1)

    @pl.when(r == 0)
    def _():
        mn_a_ref[...] = jnp.full(mn_a_ref.shape, jnp.inf, jnp.float32)
        mn_b_ref[...] = jnp.full(mn_b_ref.shape, jnp.inf, jnp.float32)
        mx_a_ref[...] = jnp.full(mx_a_ref.shape, -jnp.inf, jnp.float32)
        mx_b_ref[...] = jnp.full(mx_b_ref.shape, -jnp.inf, jnp.float32)

    row_ok = None
    if mask_rows:
        sub = lax.broadcasted_iota(jnp.int32, (row_blk, 1), 0)
        row_ok = (r * row_blk + sub) < n_rows

    def mm(x_ref, mn_ref, mx_ref):
        x = x_ref[...].astype(jnp.float32)
        if mask_rows:
            xmn = jnp.where(row_ok, x, jnp.inf)     # tail rows never win min/max
            xmx = jnp.where(row_ok, x, -jnp.inf)
        else:
            xmn = xmx = x
        mn_ref[...] = jnp.minimum(mn_ref[...], jnp.min(xmn, axis=0, keepdims=True))
        mx_ref[...] = jnp.maximum(mx_ref[...], jnp.max(xmx, axis=0, keepdims=True))

    mm(a_ref, mn_a_ref, mx_a_ref)
    mm(b_ref, mn_b_ref, mx_b_ref)


# --------------------------------------------------------------------------
# Pass 2: histogram counts (VMEM scratch accumulator) + entropy
# --------------------------------------------------------------------------
def _hist_entropy_kernel(mn_a_ref, mx_a_ref, mn_b_ref, mx_b_ref, a_ref, b_ref,
                         oa_ref, ob_ref, cnt_a, cnt_b, *,
                         bins, bins_pad, n_rows, row_blk, f_total, f_tile,
                         mask_rows, mask_cols):
    r = pl.program_id(1)
    nr = pl.num_programs(1)

    @pl.when(r == 0)
    def _():
        cnt_a[...] = jnp.zeros_like(cnt_a)
        cnt_b[...] = jnp.zeros_like(cnt_b)

    col_ok = None
    if mask_cols:
        lane = lax.broadcasted_iota(jnp.int32, (1, f_tile), 1)
        col_ok = (pl.program_id(0) * f_tile + lane) < f_total
    row_ok = None
    if mask_rows:
        sub = lax.broadcasted_iota(jnp.int32, (row_blk, 1), 0)
        row_ok = (r * row_blk + sub) < n_rows

    def accum(x_ref, mn_ref, mx_ref, cnt_ref):
        x = x_ref[...].astype(jnp.float32)
        mn = mn_ref[...]
        mx = mx_ref[...]
        if mask_cols:                               # padded lanes may hold NaN garbage
            mn = jnp.where(col_ok, mn, 0.0)
            mx = jnp.where(col_ok, mx, 0.0)
        width = mx - mn
        inv = jnp.where(width > 0.0, jnp.float32(bins) / width, 0.0)

        if mask_rows and mask_cols:
            valid = jnp.logical_and(row_ok, col_ok)
        elif mask_rows:
            valid = row_ok
        elif mask_cols:
            valid = col_ok
        else:
            valid = None
        if valid is not None:
            x = jnp.where(valid, x, mn)             # no NaN/garbage reaches the int cast

        # No lower clip needed: x >= mn so the product is >= 0.  x == max lands
        # in the last bin via the `>= bins-1` test (matches torch.histc).
        bidx = jnp.floor((x - mn) * inv).astype(jnp.int32)
        if mask_rows:
            bidx = jnp.where(row_ok, bidx, -1)      # tail rows match no bin test

        rows = []
        for k in range(bins):
            hit = (bidx >= bins - 1) if k == bins - 1 else (bidx == k)
            rows.append(jnp.sum(hit, axis=0, keepdims=True).astype(jnp.int32))
        if bins_pad > bins:
            rows.append(jnp.zeros((bins_pad - bins, x.shape[1]), jnp.int32))
        cnt_ref[...] = cnt_ref[...] + jnp.concatenate(rows, axis=0)

    accum(a_ref, mn_a_ref, mx_a_ref, cnt_a)
    accum(b_ref, mn_b_ref, mx_b_ref, cnt_b)

    @pl.when(r == nr - 1)
    def _():
        def entropy(cnt_ref, mn_ref, mx_ref):
            # Dead padded bin rows hold count 0 -> contribute exactly 0.
            p = cnt_ref[...].astype(jnp.float32) * jnp.float32(1.0 / n_rows)
            ent = -jnp.sum(p * jnp.log(p + 1e-12), axis=0, keepdims=True)
            width = mx_ref[...] - mn_ref[...]
            return jnp.where(width > 0.0, ent, 0.0)   # constant columns -> 0
        oa_ref[...] = entropy(cnt_a, mn_a_ref, mx_a_ref)
        ob_ref[...] = entropy(cnt_b, mn_b_ref, mx_b_ref)


# --------------------------------------------------------------------------
# Host-side wrappers
# --------------------------------------------------------------------------
def compute_entropies_pallas(a: jnp.ndarray, b: jnp.ndarray, *, bins: int,
                             f_tile: int | None = None,
                             row_block: int | None = None):
    """a, b: [N, F]  ->  (H_a, H_b), per-feature entropies of shape [F]."""
    N, F = a.shape
    assert b.shape == (N, F), (a.shape, b.shape)

    budget = _vmem_budget_bytes()
    if f_tile is None:
        f_tile = _pick_f_tile(F)
    if row_block is None:
        row_block = _pick_row_block(N, f_tile, budget)
    if row_block >= N:
        row_block = N                                # full-dim block, 1 row step
    elif row_block % 8 != 0:
        row_block = max(8, (row_block // 8) * 8)

    mask_rows = (row_block < N) and (N % row_block != 0)
    mask_cols = (F % f_tile != 0)
    n_ft = pl.cdiv(F, f_tile)
    n_rb = pl.cdiv(N, row_block)
    bins_pad = ((bins + 7) // 8) * 8

    cparams = pltpu.CompilerParams(
        dimension_semantics=("parallel", "arbitrary"),
        vmem_limit_bytes=budget)

    x_spec = pl.BlockSpec((row_block, f_tile), lambda i, r: (r, i))
    col_spec = pl.BlockSpec((1, f_tile), lambda i, r: (0, i))

    # ---- pass 1: per-column min / max ------------------------------------
    mm_kernel = functools.partial(_minmax_kernel, n_rows=N, row_blk=row_block,
                                  mask_rows=mask_rows)
    mn_a, mx_a, mn_b, mx_b = pl.pallas_call(
        mm_kernel,
        out_shape=tuple(jax.ShapeDtypeStruct((1, F), jnp.float32)
                        for _ in range(4)),
        grid=(n_ft, n_rb),
        in_specs=[x_spec, x_spec],
        out_specs=tuple(col_spec for _ in range(4)),
        compiler_params=cparams,
    )(a, b)

    # ---- pass 2: histogram + entropy --------------------------------------
    he_kernel = functools.partial(
        _hist_entropy_kernel, bins=bins, bins_pad=bins_pad, n_rows=N,
        row_blk=row_block, f_total=F, f_tile=f_tile,
        mask_rows=mask_rows, mask_cols=mask_cols)
    ha, hb = pl.pallas_call(
        he_kernel,
        out_shape=(jax.ShapeDtypeStruct((1, F), jnp.float32),
                   jax.ShapeDtypeStruct((1, F), jnp.float32)),
        grid=(n_ft, n_rb),
        in_specs=[col_spec, col_spec, col_spec, col_spec, x_spec, x_spec],
        out_specs=(col_spec, col_spec),
        scratch_shapes=[pltpu.VMEM((bins_pad, f_tile), jnp.int32),
                        pltpu.VMEM((bins_pad, f_tile), jnp.int32)],
        compiler_params=cparams,
    )(mn_a, mx_a, mn_b, mx_b, a, b)
    return ha[0], hb[0]


def serial_based_feature_fusion(a: jnp.ndarray,
                                b: jnp.ndarray,
                                *,
                                bins: int = 30,
                                top_k_a: int | None = None,
                                top_k_b: int | None = None) -> jnp.ndarray:
    """Forward pass of SerialBasedFeatureFusion. a, b: [N, F] -> [N, K_a+K_b]."""
    H_a, H_b = compute_entropies_pallas(a, b, bins=bins)

    # Ranking + column gather are cheap glue, kept in plain JAX.
    # TODO(synk): tie-breaking for equal entropies may order columns
    # differently than torch.argsort(descending=True).
    if top_k_a is not None:
        _, idx_a = lax.top_k(H_a, top_k_a)
    else:
        idx_a = jnp.argsort(-H_a)
    if top_k_b is not None:
        _, idx_b = lax.top_k(H_b, top_k_b)
    else:
        idx_b = jnp.argsort(-H_b)

    a_sel = jnp.take(a, idx_a, axis=1)
    b_sel = jnp.take(b, idx_b, axis=1)
    return jnp.concatenate([a_sel, b_sel], axis=1)


# --------------------------------------------------------------------------
# Pure-JAX reference (sanity check)
# --------------------------------------------------------------------------
def _reference_entropy(x, bins):
    N, F = x.shape
    mn = x.min(axis=0)
    mx = x.max(axis=0)
    width = mx - mn
    inv = jnp.where(width > 0, bins / width, 0.0)
    idx = jnp.clip(jnp.floor((x - mn[None, :]) * inv[None, :]).astype(jnp.int32),
                   0, bins - 1)
    cnt = jnp.stack([(idx == k).sum(axis=0) for k in range(bins)],
                    axis=0).astype(jnp.float32)
    p = cnt / N
    ent = -(p * jnp.log(p + 1e-12)).sum(axis=0)
    return jnp.where(width > 0, ent, 0.0)


if __name__ == "__main__":
    key = jax.random.PRNGKey(0)
    k_a, k_b, k_c, k_d = jax.random.split(key, 4)

    # --- small case: single row block, 2-step "parallel" feature grid -------
    N, FEATURE_DIM, BINS = 8, 256, 30
    TOP_K_A, TOP_K_B = 128, 96
    a = jax.random.normal(k_a, (N, FEATURE_DIM), dtype=jnp.float32)
    b = jax.random.uniform(k_b, (N, FEATURE_DIM), dtype=jnp.float32)
    a = a.at[:, 7].set(3.14)          # constant column -> entropy-0 branch

    fused = serial_based_feature_fusion(
        a, b, bins=BINS, top_k_a=TOP_K_A, top_k_b=TOP_K_B)
    fused = jax.block_until_ready(fused)
    assert fused.shape == (N, TOP_K_A + TOP_K_B), fused.shape

    h_a, h_b = jax.block_until_ready(compute_entropies_pallas(a, b, bins=BINS))
    assert jnp.allclose(h_a, _reference_entropy(a, BINS), atol=1e-5), "H_a mismatch"
    assert jnp.allclose(h_b, _reference_entropy(b, BINS), atol=1e-5), "H_b mismatch"

    # --- row-blocked path with masked tail rows + ragged feature tile -------
    N2, F2 = 200, 192                 # 200 % 64 != 0 and 192 % 128 != 0
    c = jax.random.normal(k_c, (N2, F2), dtype=jnp.float32)
    d = jax.random.uniform(k_d, (N2, F2), dtype=jnp.float32)
    h_c, h_d = jax.block_until_ready(
        compute_entropies_pallas(c, d, bins=BINS, f_tile=128, row_block=64))
    assert jnp.allclose(h_c, _reference_entropy(c, BINS), atol=1e-5), "H_c mismatch"
    assert jnp.allclose(h_d, _reference_entropy(d, BINS), atol=1e-5), "H_d mismatch"

    fused2 = jax.block_until_ready(serial_based_feature_fusion(c, d, bins=BINS))
    assert fused2.shape == (N2, 2 * F2), fused2.shape

    print("KERNEL_OK")
</pallas_src>

<mosaic_0001>
module attributes {stable_mosaic.version = 11 : i64} {
  func.func @_minmax_kernel(%arg0: i32, %arg1: i32, %arg2: memref<8x128xf32, #tpu.memory_space<vmem>>, %arg3: memref<8x128xf32, #tpu.memory_space<vmem>>, %arg4: memref<1x128xf32, #tpu.memory_space<vmem>>, %arg5: memref<1x128xf32, #tpu.memory_space<vmem>>, %arg6: memref<1x128xf32, #tpu.memory_space<vmem>>, %arg7: memref<1x128xf32, #tpu.memory_space<vmem>>) attributes {dimension_semantics = [#tpu.dimension_semantics<parallel>, #tpu.dimension_semantics<arbitrary>], iteration_bounds = array<i64: 2, 1>, scalar_prefetch = 0 : i64, scratch_operands = 0 : i64, tpu.core_type = #tpu.core_type<tc>, window_params = [{transform_indices = @transform_0, window_bounds = array<i64: 8, 128>}, {transform_indices = @transform_1, window_bounds = array<i64: 8, 128>}, {transform_indices = @transform_2, window_bounds = array<i64: 1, 128>}, {transform_indices = @transform_3, window_bounds = array<i64: 1, 128>}, {transform_indices = @transform_4, window_bounds = array<i64: 1, 128>}, {transform_indices = @transform_5, window_bounds = array<i64: 1, 128>}]} {
    %c0_i32 = arith.constant 0 : i32
    %0 = arith.cmpi eq, %arg1, %c0_i32 : i32
    %1 = arith.extui %0 : i1 to i32
    %c0_i32_0 = arith.constant 0 : i32
    %2 = arith.cmpi ne, %1, %c0_i32_0 : i32
    scf.if %2 {
      %cst_23 = arith.constant 0x7F800000 : f32
      %25 = vector.broadcast %cst_23 : f32 to vector<1x128xf32>
      %c0_24 = arith.constant 0 : index
      %c0_25 = arith.constant 0 : index
      %26 = vector.load %arg4[%c0_24, %c0_25] : memref<1x128xf32, #tpu.memory_space<vmem>>, vector<1x128xf32>
      tpu.vector_store %arg4[%c0_24, %c0_25], %25 {strides = array<i32>} : memref<1x128xf32, #tpu.memory_space<vmem>>, vector<1x128xf32>,
      %cst_26 = arith.constant 0x7F800000 : f32
      %27 = vector.broadcast %cst_26 : f32 to vector<1x128xf32>
      %c0_27 = arith.constant 0 : index
      %c0_28 = arith.constant 0 : index
      %28 = vector.load %arg6[%c0_27, %c0_28] : memref<1x128xf32, #tpu.memory_space<vmem>>, vector<1x128xf32>
      tpu.vector_store %arg6[%c0_27, %c0_28], %27 {strides = array<i32>} : memref<1x128xf32, #tpu.memory_space<vmem>>, vector<1x128xf32>,
      %cst_29 = arith.constant 0xFF800000 : f32
      %29 = vector.broadcast %cst_29 : f32 to vector<1x128xf32>
      %c0_30 = arith.constant 0 : index
      %c0_31 = arith.constant 0 : index
      %30 = vector.load %arg5[%c0_30, %c0_31] : memref<1x128xf32, #tpu.memory_space<vmem>>, vector<1x128xf32>
      tpu.vector_store %arg5[%c0_30, %c0_31], %29 {strides = array<i32>} : memref<1x128xf32, #tpu.memory_space<vmem>>, vector<1x128xf32>,
      %cst_32 = arith.constant 0xFF800000 : f32
      %31 = vector.broadcast %cst_32 : f32 to vector<1x128xf32>
      %c0_33 = arith.constant 0 : index
      %c0_34 = arith.constant 0 : index
      %32 = vector.load %arg7[%c0_33, %c0_34] : memref<1x128xf32, #tpu.memory_space<vmem>>, vector<1x128xf32>
      tpu.vector_store %arg7[%c0_33, %c0_34], %31 {strides = array<i32>} : memref<1x128xf32, #tpu.memory_space<vmem>>, vector<1x128xf32>,
    } else {
    }
    %c0 = arith.constant 0 : index
    %c0_1 = arith.constant 0 : index
    %3 = vector.load %arg2[%c0, %c0_1] : memref<8x128xf32, #tpu.memory_space<vmem>>, vector<8x128xf32>
    %c0_2 = arith.constant 0 : index
    %c0_3 = arith.constant 0 : index
    %4 = vector.load %arg4[%c0_2, %c0_3] : memref<1x128xf32, #tpu.memory_space<vmem>>, vector<1x128xf32>
    %cst = arith.constant dense<0x7F800000> : vector<128xf32>
    %5 = vector.multi_reduction <minimumf>, %3, %cst [0] : vector<8x128xf32> to vector<128xf32>
    %6 = vector.shape_cast %5 : vector<128xf32> to vector<1x128xf32>
    %7 = arith.minimumf %4, %6 : vector<1x128xf32>
    %c0_4 = arith.constant 0 : index
    %c0_5 = arith.constant 0 : index
    %8 = vector.load %arg4[%c0_4, %c0_5] : memref<1x128xf32, #tpu.memory_space<vmem>>, vector<1x128xf32>
    tpu.vector_store %arg4[%c0_4, %c0_5], %7 {strides = array<i32>} : memref<1x128xf32, #tpu.memory_space<vmem>>, vector<1x128xf32>,
    %c0_6 = arith.constant 0 : index
    %c0_7 = arith.constant 0 : index
    %9 = vector.load %arg5[%c0_6, %c0_7] : memref<1x128xf32, #tpu.memory_space<vmem>>, vector<1x128xf32>
    %cst_8 = arith.constant dense<0xFF800000> : vector<128xf32>
    %10 = vector.multi_reduction <maximumf>, %3, %cst_8 [0] : vector<8x128xf32> to vector<128xf32>
    %11 = vector.shape_cast %10 : vector<128xf32> to vector<1x128xf32>
    %12 = arith.maximumf %9, %11 : vector<1x128xf32>
    %c0_9 = arith.constant 0 : index
    %c0_10 = arith.constant 0 : index
    %13 = vector.load %arg5[%c0_9, %c0_10] : memref<1x128xf32, #tpu.memory_space<vmem>>, vector<1x128xf32>
    tpu.vector_store %arg5[%c0_9, %c0_10], %12 {strides = array<i32>} : memref<1x128xf32, #tpu.memory_space<vmem>>, vector<1x128xf32>,
    %c0_11 = arith.constant 0 : index
    %c0_12 = arith.constant 0 : index
    %14 = vector.load %arg3[%c0_11, %c0_12] : memref<8x128xf32, #tpu.memory_space<vmem>>, vector<8x128xf32>
    %c0_13 = arith.constant 0 : index
    %c0_14 = arith.constant 0 : index
    %15 = vector.load %arg6[%c0_13, %c0_14] : memref<1x128xf32, #tpu.memory_space<vmem>>, vector<1x128xf32>
    %cst_15 = arith.constant dense<0x7F800000> : vector<128xf32>
    %16 = vector.multi_reduction <minimumf>, %14, %cst_15 [0] : vector<8x128xf32> to vector<128xf32>
    %17 = vector.shape_cast %16 : vector<128xf32> to vector<1x128xf32>
    %18 = arith.minimumf %15, %17 : vector<1x128xf32>
    %c0_16 = arith.constant 0 : index
    %c0_17 = arith.constant 0 : index
    %19 = vector.load %arg6[%c0_16, %c0_17] : memref<1x128xf32, #tpu.memory_space<vmem>>, vector<1x128xf32>
    tpu.vector_store %arg6[%c0_16, %c0_17], %18 {strides = array<i32>} : memref<1x128xf32, #tpu.memory_space<vmem>>, vector<1x128xf32>,
    %c0_18 = arith.constant 0 : index
    %c0_19 = arith.constant 0 : index
    %20 = vector.load %arg7[%c0_18, %c0_19] : memref<1x128xf32, #tpu.memory_space<vmem>>, vector<1x128xf32>
    %cst_20 = arith.constant dense<0xFF800000> : vector<128xf32>
    %21 = vector.multi_reduction <maximumf>, %14, %cst_20 [0] : vector<8x128xf32> to vector<128xf32>
    %22 = vector.shape_cast %21 : vector<128xf32> to vector<1x128xf32>
    %23 = arith.maximumf %20, %22 : vector<1x128xf32>
    %c0_21 = arith.constant 0 : index
    %c0_22 = arith.constant 0 : index
    %24 = vector.load %arg7[%c0_21, %c0_22] : memref<1x128xf32, #tpu.memory_space<vmem>>, vector<1x128xf32>
    tpu.vector_store %arg7[%c0_21, %c0_22], %23 {strides = array<i32>} : memref<1x128xf32, #tpu.memory_space<vmem>>, vector<1x128xf32>,
    return
  }
  func.func @transform_0(%arg0: i32, %arg1: i32) -> (i32, i32) {
    %c0_i32 = arith.constant 0 : i32
    return %arg1, %arg0 : i32, i32
  }
  func.func @transform_1(%arg0: i32, %arg1: i32) -> (i32, i32) {
    %c0_i32 = arith.constant 0 : i32
    return %arg1, %arg0 : i32, i32
  }
  func.func @transform_2(%arg0: i32, %arg1: i32) -> (i32, i32) {
    %c0_i32 = arith.constant 0 : i32
    %c0_i32_0 = arith.constant 0 : i32
    return %c0_i32, %arg0 : i32, i32
  }
  func.func @transform_3(%arg0: i32, %arg1: i32) -> (i32, i32) {
    %c0_i32 = arith.constant 0 : i32
    %c0_i32_0 = arith.constant 0 : i32
    return %c0_i32, %arg0 : i32, i32
  }
  func.func @transform_4(%arg0: i32, %arg1: i32) -> (i32, i32) {
    %c0_i32 = arith.constant 0 : i32
    %c0_i32_0 = arith.constant 0 : i32
    return %c0_i32, %arg0 : i32, i32
  }
  func.func @transform_5(%arg0: i32, %arg1: i32) -> (i32, i32) {
    %c0_i32 = arith.constant 0 : i32
    %c0_i32_0 = arith.constant 0 : i32
    return %c0_i32, %arg0 : i32, i32
  }
}

</mosaic_0001>

<llo_original>
// kernel: tpu_custom_call.1
$region0: #{tpu_custom_call.1}
  #allocation0 [shape = 'u32[]', space=smem, size = 0x4, offset = 0x4, fixed_abs, tag = 'smem constant byte address 0x4 - core index']
  #allocation1 [shape = 'u32[72,128]{1,0:T(1,128)}', space=vmem, size = 0x9000, scoped, tag = 'internal scratch']
  %s0 = inlined_call_operand.hbm [shape: f32[8,256], index: 0, kind: input, shape index: {}]
  %s1 = inlined_call_operand.hbm [shape: f32[8,256], index: 1, kind: input, shape index: {}]
  %s2 = inlined_call_operand.hbm [shape: f32[1,256], index: 2, kind: output, shape index: {0}]
  %s3 = inlined_call_operand.hbm [shape: f32[1,256], index: 3, kind: output, shape index: {1}]
  %s4 = inlined_call_operand.hbm [shape: f32[1,256], index: 4, kind: output, shape index: {2}]
  %s5 = inlined_call_operand.hbm [shape: f32[1,256], index: 5, kind: output, shape index: {3}]
  %6 = xla_tuple %s2, %s3, %s4, %s5
  %s7 = sld [smem:[#allocation0]]
  $region77: #{tpu_custom_call.1} parent=0
    _
  %s9 = ssub.s32 1, %s7
  %s10 = scalar_select 0, %s9, %s7
  $region1: #{tpu_custom_call.1} parent=0
    #allocation2 [shape = 'u8[8192]{0}', space=vmem, size = 0x2000, scoped, tag = 'input window, operand 0']
    #allocation3 [shape = 's32[2]{0}', space=sflag, size = 0x8, scoped, tag = 'scoped memory for tpu_custom_call.1']
    #allocation4 [shape = 's32[2]{0}', space=sflag, size = 0x8, scoped, tag = 'scoped memory for tpu_custom_call.1']
    #allocation5 [shape = 'u8[8192]{0}', space=vmem, size = 0x2000, scoped, tag = 'input window, operand 1']
    #allocation6 [shape = 's32[2]{0}', space=sflag, size = 0x8, scoped, tag = 'scoped memory for tpu_custom_call.1']
    #allocation7 [shape = 'u8[1024]{0}', space=vmem, size = 0x400, scoped, tag = 'output window, operand 0']
    #allocation8 [shape = 'u8[1024]{0}', space=vmem, size = 0x400, scoped, tag = 'output window, operand 1']
    #allocation9 [shape = 's32[2]{0}', space=sflag, size = 0x8, scoped, tag = 'scoped memory for tpu_custom_call.1']
    #allocation10 [shape = 'u8[1024]{0}', space=vmem, size = 0x400, scoped, tag = 'output window, operand 2']
    #allocation11 [shape = 'u8[1024]{0}', space=vmem, size = 0x400, scoped, tag = 'output window, operand 3']
    #allocation12 [shape = 's32[2]{0}', space=sflag, size = 0x8, scoped, tag = 'scoped memory for tpu_custom_call.1']
    %11 = vsyncpa [#allocation3], 0
    %s12 = scalar_lea.sflag [#allocation3], 1
    %13 = vsyncpa %s12, 0
    %14 = vsyncpa [#allocation6], 0
    %s15 = scalar_lea.sflag [#allocation6], 1
    %16 = vsyncpa %s15, 0
    %17 = vsyncpa [#allocation4], 0
    %s18 = scalar_lea.sflag [#allocation4], 1
    %19 = vsyncpa %s18, 0
    %20 = vsyncpa [#allocation9], 0
    %s21 = scalar_lea.sflag [#allocation9], 1
    %22 = vsyncpa %s21, 0
    %23 = vsyncpa [#allocation12], 0
    %s24 = scalar_lea.sflag [#allocation12], 1
    %25 = vsyncpa %s24, 0
    loop: start=0, step=1, limit=4
    $region2: #{tpu_custom_call.1} parent=1 // loop_pre_header
      _
    $region3: #{tpu_custom_call.1} parent=1 // loop_header
      %s27 = sphi 0, %s31
      %p28 = scmp.ge.s32.totalorder %s27, 4
      %s34 = sphi 0, %s46
      %s35 = sphi 0, %s42
      %s36 = sphi 0, %s34
      %s37 = sphi 0, %s35
      %s38 = sphi 0, %s36
      %s39 = sphi 0, %s37
      %s51 = sphi 0, %s53
      %s54 = sphi 0, %s51
      %s55 = sphi 0, %s54
      %s71 = sphi 0, %s55
      %s79 = sphi 0, %s81
      %s82 = sphi 0, %s79
      %s83 = sphi 0, %s82
      %s99 = sphi 0, %s83
      %s105 = sphi 0, %s107
      %s108 = sphi 0, %s105
      %s109 = sphi 0, %s108
      %s125 = sphi 0, %s109
      %s131 = sphi 0, %s133
      %s134 = sphi 0, %s131
      %s135 = sphi 0, %s134
      %s151 = sphi 0, %s135
      %s157 = sphi 0, %s159
      %s160 = sphi 0, %s157
      %s161 = sphi 0, %s160
      %s177 = sphi 0, %s161
      %s183 = sphi 0, %s185
      %s186 = sphi 0, %s183
      %s187 = sphi 0, %s186
      %s203 = sphi 0, %s187
    $region4: #{tpu_custom_call.1} parent=1 // loop_header_branch
      %30 = sbr.rel (%p28) target = $region8
    $region5: #{tpu_custom_call.1} parent=1 // loop_body
      %s32 = ssub.s32 %s27, 1
      %s33 = ssub.s32 %s27, 2
      %s40 = sadd.s32 1, %s35
      %p41 = scmp.ge.s32.totalorder %s40, 1
      %s42 = scalar_select %p41, 0, %s40
      %s43 = sadd.s32 1, %s34
      %s44 = scalar_select %p41, %s43, %s34
      %p45 = scmp.ge.s32.totalorder %s44, 2
      %s46 = scalar_select %p45, 0, %s44
      %s47 = ssub.s32 %s35, %s42
      %s48 = ssub.s32 %s34, %s46
      %s49 = sor.u32 %s47, %s48
      %p50 = scmp.eq.s32.totalorder %s49, 0
      %s52 = sadd.s32 %s51, 1
      %s53 = scalar_select %p50, %s51, %s52
      %p56 = pneg %p50
      %p57 = scmp.eq.s32.totalorder %s27, 1
      %p58 = por %p56, %p57
      %p59 = scmp.ne.s32.totalorder %s51, %s54
      %p60 = scmp.eq.s32.totalorder %s27, 0
      %p61 = por %p59, %p60
      %p62 = scmp.ne.s32.totalorder %s51, %s54
      %p63 = scmp.eq.s32.totalorder %s32, 1
      %p64 = por %p62, %p63
      %p65 = scmp.ne.s32.totalorder %s54, %s55
      %p66 = scmp.eq.s32.totalorder %s32, 0
      %p67 = por %p65, %p66
      %p68 = scmp.ne.s32.totalorder %s54, %s55
      %p69 = scmp.eq.s32.totalorder %s33, 1
      %p70 = por %p68, %p69
      %p72 = scmp.ne.s32.totalorder %s55, %s71
      %p73 = scmp.eq.s32.totalorder %s33, 0
      %p74 = por %p72, %p73
      %s75 = ssub.s32 %s35, %s42
      %s76 = ssub.s32 %s34, %s46
      %s77 = sor.u32 %s75, %s76
      %p78 = scmp.eq.s32.totalorder %s77, 0
      %s80 = sadd.s32 %s79, 1
      %s81 = scalar_select %p78, %s79, %s80
      %p84 = pneg %p78
      %p85 = scmp.eq.s32.totalorder %s27, 1
      %p86 = por %p84, %p85
      %p87 = scmp.ne.s32.totalorder %s79, %s82
      %p88 = scmp.eq.s32.totalorder %s27, 0
      %p89 = por %p87, %p88
      %p90 = scmp.ne.s32.totalorder %s79, %s82
      %p91 = scmp.eq.s32.totalorder %s32, 1
      %p92 = por %p90, %p91
      %p93 = scmp.ne.s32.totalorder %s82, %s83
      %p94 = scmp.eq.s32.totalorder %s32, 0
      %p95 = por %p93, %p94
      %p96 = scmp.ne.s32.totalorder %s82, %s83
      %p97 = scmp.eq.s32.totalorder %s33, 1
      %p98 = por %p96, %p97
      %p100 = scmp.ne.s32.totalorder %s83, %s99
      %p101 = scmp.eq.s32.totalorder %s33, 0
      %p102 = por %p100, %p101
      %s103 = ssub.s32 %s34, %s46
      %p104 = scmp.eq.s32.totalorder %s103, 0
      %s106 = sadd.s32 %s105, 1
      %s107 = scalar_select %p104, %s105, %s106
      %p110 = pneg %p104
      %p111 = scmp.eq.s32.totalorder %s27, 1
      %p112 = por %p110, %p111
      %p113 = scmp.ne.s32.totalorder %s105, %s108
      %p114 = scmp.eq.s32.totalorder %s27, 0
      %p115 = por %p113, %p114
      %p116 = scmp.ne.s32.totalorder %s105, %s108
      %p117 = scmp.eq.s32.totalorder %s32, 1
      %p118 = por %p116, %p117
      %p119 = scmp.ne.s32.totalorder %s108, %s109
      %p120 = scmp.eq.s32.totalorder %s32, 0
      %p121 = por %p119, %p120
      %p122 = scmp.ne.s32.totalorder %s108, %s109
      %p123 = scmp.eq.s32.totalorder %s33, 1
      %p124 = por %p122, %p123
      %p126 = scmp.ne.s32.totalorder %s109, %s125
      %p127 = scmp.eq.s32.totalorder %s33, 0
      %p128 = por %p126, %p127
      %s129 = ssub.s32 %s34, %s46
      %p130 = scmp.eq.s32.totalorder %s129, 0
      %s132 = sadd.s32 %s131, 1
      %s133 = scalar_select %p130, %s131, %s132
      %p136 = pneg %p130
      %p137 = scmp.eq.s32.totalorder %s27, 1
      %p138 = por %p136, %p137
      %p139 = scmp.ne.s32.totalorder %s131, %s134
      %p140 = scmp.eq.s32.totalorder %s27, 0
      %p141 = por %p139, %p140
      %p142 = scmp.ne.s32.totalorder %s131, %s134
      %p143 = scmp.eq.s32.totalorder %s32, 1
      %p144 = por %p142, %p143
      %p145 = scmp.ne.s32.totalorder %s134, %s135
      %p146 = scmp.eq.s32.totalorder %s32, 0
      %p147 = por %p145, %p146
      %p148 = scmp.ne.s32.totalorder %s134, %s135
      %p149 = scmp.eq.s32.totalorder %s33, 1
      %p150 = por %p148, %p149
      %p152 = scmp.ne.s32.totalorder %s135, %s151
      %p153 = scmp.eq.s32.totalorder %s33, 0
      %p154 = por %p152, %p153
      %s155 = ssub.s32 %s34, %s46
      %p156 = scmp.eq.s32.totalorder %s155, 0
      %s158 = sadd.s32 %s157, 1
      %s159 = scalar_select %p156, %s157, %s158
      %p162 = pneg %p156
      %p163 = scmp.eq.s32.totalorder %s27, 1
      %p164 = por %p162, %p163
      %p165 = scmp.ne.s32.totalorder %s157, %s160
      %p166 = scmp.eq.s32.totalorder %s27, 0
      %p167 = por %p165, %p166
      %p168 = scmp.ne.s32.totalorder %s157, %s160
      %p169 = scmp.eq.s32.totalorder %s32, 1
      %p170 = por %p168, %p169
      %p171 = scmp.ne.s32.totalorder %s160, %s161
      %p172 = scmp.eq.s32.totalorder %s32, 0
      %p173 = por %p171, %p172
      %p174 = scmp.ne.s32.totalorder %s160, %s161
      %p175 = scmp.eq.s32.totalorder %s33, 1
      %p176 = por %p174, %p175
      %p178 = scmp.ne.s32.totalorder %s161, %s177
      %p179 = scmp.eq.s32.totalorder %s33, 0
      %p180 = por %p178, %p179
      %s181 = ssub.s32 %s34, %s46
      %p182 = scmp.eq.s32.totalorder %s181, 0
      %s184 = sadd.s32 %s183, 1
      %s185 = scalar_select %p182, %s183, %s184
      %p188 = pneg %p182
      %p189 = scmp.eq.s32.totalorder %s27, 1
      %p190 = por %p188, %p189
      %p191 = scmp.ne.s32.totalorder %s183, %s186
      %p192 = scmp.eq.s32.totalorder %s27, 0
      %p193 = por %p191, %p192
      %p194 = scmp.ne.s32.totalorder %s183, %s186
      %p195 = scmp.eq.s32.totalorder %s32, 1
      %p196 = por %p194, %p195
      %p197 = scmp.ne.s32.totalorder %s186, %s187
      %p198 = scmp.eq.s32.totalorder %s32, 0
      %p199 = por %p197, %p198
      %p200 = scmp.ne.s32.totalorder %s186, %s187
      %p201 = scmp.eq.s32.totalorder %s33, 1
      %p202 = por %p200, %p201
      %p204 = scmp.ne.s32.totalorder %s187, %s203
      %p205 = scmp.eq.s32.totalorder %s33, 0
      %p206 = por %p204, %p205
      %p207 = scmp.le.s32.totalorder 1, %s27
      %p208 = scmp.lt.s32.totalorder %s27, 3
      %p209 = pnand %p207, %p208
      %p210 = pneg %p209
      // Predicated region
      $region9: #{tpu_custom_call.1} parent=5 // pred_check
        _
      $region10: #{tpu_custom_call.1} parent=5 // pred_check_branch
        %212 = sbr.rel (%p209) target = $region12
      $region11: #{tpu_custom_call.1} parent=5 // pred_region
        %s213 = ssub.s32 %s27, 1
      $region12: #{tpu_custom_call.1} parent=5 // pred_fallthru
        _
      %p214 = scmp.lt.s32.totalorder %s27, 2
      // Predicated region
      $region13: #{tpu_custom_call.1} parent=5 // pred_check
        %p215 = pneg %p214
      $region14: #{tpu_custom_call.1} parent=5 // pred_check_branch
        %217 = sbr.rel (%p215) target = $region16
      $region15: #{tpu_custom_call.1} parent=5 // pred_region
        // Predicated region
        $region17: #{tpu_custom_call.1} parent=15 // pred_check
          %p218 = pneg %p61
        $region18: #{tpu_custom_call.1} parent=15 // pred_check_branch
          %220 = sbr.rel (%p218) target = $region20
        $region19: #{tpu_custom_call.1} parent=15 // pred_region
          %s221 = sand.u32 %s51, 1
          %s222 = scalar_lea.sflag [#allocation3], %s221
          %s223 = sand.u32 %s51, 1
          %s224 = smul.addr %s223, 8
          %s225 = scalar_lea.vmem [#allocation2], %s224
          %227 = vsyncadd %s222, 0
          %s228 = smul.addr %s35, 2
          %s229 = sadd.s32 %s34, %s228
          %s230 = smul.addr %s229, 8
          %s231 = scalar_lea.hbm %s0, %s230
          %s233 = sshll.u32 %s231, 4
          %s234 = int_to_ptr.hbm [resolvable:$true] %s233
          %s235 = sshll.u32 %s225, 4
          %s236 = int_to_ptr.vmem [resolvable:$true] %s235
          %238 = dma.hbm_to_vmem [thread:$0]  %s234, 128, %s236, %s222
        $region20: #{tpu_custom_call.1} parent=15 // pred_fallthru
          _
        // Predicated region
        $region21: #{tpu_custom_call.1} parent=15 // pred_check
          %p239 = pneg %p89
        $region22: #{tpu_custom_call.1} parent=15 // pred_check_branch
          %241 = sbr.rel (%p239) target = $region24
        $region23: #{tpu_custom_call.1} parent=15 // pred_region
          %s242 = sand.u32 %s79, 1
          %s243 = scalar_lea.sflag [#allocation6], %s242
          %s244 = sand.u32 %s79, 1
          %s245 = smul.addr %s244, 8
          %s246 = scalar_lea.vmem [#allocation5], %s245
          %248 = vsyncadd %s243, 0
          %s249 = smul.addr %s35, 2
          %s250 = sadd.s32 %s34, %s249
          %s251 = smul.addr %s250, 8
          %s252 = scalar_lea.hbm %s1, %s251
          %s254 = sshll.u32 %s252, 4
          %s255 = int_to_ptr.hbm [resolvable:$true] %s254
          %s256 = sshll.u32 %s246, 4
          %s257 = int_to_ptr.vmem [resolvable:$true] %s256
          %259 = dma.hbm_to_vmem [thread:$0]  %s255, 128, %s257, %s243
        $region24: #{tpu_custom_call.1} parent=15 // pred_fallthru
          _
      $region16: #{tpu_custom_call.1} parent=5 // pred_fallthru
        _
      %p260 = scmp.le.s32.totalorder 1, %s27
      %p261 = scmp.lt.s32.totalorder %s27, 3
      %p262 = pnand %p260, %p261
      %p263 = pneg %p262
      // Predicated region
      $region25: #{tpu_custom_call.1} parent=5 // pred_check
        _
      $region26: #{tpu_custom_call.1} parent=5 // pred_check_branch
        %265 = sbr.rel (%p262) target = $region28
      $region27: #{tpu_custom_call.1} parent=5 // pred_region
        %s266 = ssub.s32 %s27, 1
        %s267 = sand.u32 %s54, 1
        %s268 = scalar_lea.sflag [#allocation3], %s267
        %s269 = sand.u32 %s54, 1
        %s270 = smul.addr %s269, 8
        %s271 = scalar_lea.vmem [#allocation2], %s270
        // Predicated region
        $region29: #{tpu_custom_call.1} parent=27 // pred_check
          %p272 = pneg %p67
        $region30: #{tpu_custom_call.1} parent=27 // pred_check_branch
          %274 = sbr.rel (%p272) target = $region32
        $region31: #{tpu_custom_call.1} parent=27 // pred_region
          %276 = dma.done %s268, 128
        $region32: #{tpu_custom_call.1} parent=27 // pred_fallthru
          _
        %s277 = sand.u32 %s82, 1
        %s278 = scalar_lea.sflag [#allocation6], %s277
        %s279 = sand.u32 %s82, 1
        %s280 = smul.addr %s279, 8
        %s281 = scalar_lea.vmem [#allocation5], %s280
        // Predicated region
        $region33: #{tpu_custom_call.1} parent=27 // pred_check
          %p282 = pneg %p95
        $region34: #{tpu_custom_call.1} parent=27 // pred_check_branch
          %284 = sbr.rel (%p282) target = $region36
        $region35: #{tpu_custom_call.1} parent=27 // pred_region
          %286 = dma.done %s278, 128
        $region36: #{tpu_custom_call.1} parent=27 // pred_fallthru
          _
        %s287 = sand.u32 %s54, 1
        %s288 = scalar_lea.sflag [#allocation3], %s287
        %s289 = sand.u32 %s54, 1
        %s290 = smul.addr %s289, 8
        %s291 = scalar_lea.vmem [#allocation2], %s290
        %p292 = pneg %p67
        %p293 = pneg %p64
        %s294 = sand.u32 %s82, 1
        %s295 = scalar_lea.sflag [#allocation6], %s294
        %s296 = sand.u32 %s82, 1
        %s297 = smul.addr %s296, 8
        %s298 = scalar_lea.vmem [#allocation5], %s297
        %p299 = pneg %p95
        %p300 = pneg %p92
        %p301 = pneg %p121
        %p302 = pneg %p118
        %s303 = sand.u32 %s108, 1
        %s304 = scalar_lea.sflag [#allocation4], %s303
        %s305 = sand.u32 %s108, 1
        %s306 = scalar_lea.vmem [#allocation7], %s305
        %p307 = pneg %p147
        %p308 = pneg %p144
        %s309 = sand.u32 %s32, 1
        %s310 = scalar_lea.sflag [#allocation9], %s309
        %s311 = sand.u32 %s134, 1
        %s312 = scalar_lea.vmem [#allocation8], %s311
        %p313 = pneg %p173
        %p314 = pneg %p170
        %s315 = sand.u32 %s32, 1
        %s316 = scalar_lea.sflag [#allocation9], %s315
        %s317 = sand.u32 %s160, 1
        %s318 = scalar_lea.vmem [#allocation10], %s317
        %p319 = pneg %p199
        %p320 = pneg %p196
        %s321 = sand.u32 %s186, 1
        %s322 = scalar_lea.sflag [#allocation12], %s321
        %s323 = sand.u32 %s186, 1
        %s324 = scalar_lea.vmem [#allocation11], %s323
        %p325 = scmp.eq.s32.totalorder %s37, 0
        // Predicated region
        $region37: #{tpu_custom_call.1} parent=27 // pred_check
          %p326 = pneg %p325
        $region38: #{tpu_custom_call.1} parent=27 // pred_check_branch
          %328 = sbr.rel (%p326) target = $region40
        $region39: #{tpu_custom_call.1} parent=27 // pred_region
          %329 = vst [vmem:[%s306] sm:$0x1] inf
          %330 = vst [vmem:[%s318] sm:$0x1] inf
          %331 = vst [vmem:[%s312] sm:$0x1] -inf
          %332 = vst [vmem:[%s324] sm:$0x1] -inf
        $region40: #{tpu_custom_call.1} parent=27 // pred_fallthru
          _
        %v333 = vld [vmem:[%s271] sm:$0xff]
        %v334 = vld [vmem:[%s306] sm:$0x1]
        %v335 = vrot.slane %v333, 4
        %v336 = vmin.f32 %v333, %v335
        %v337 = vrot.slane %v336, 2
        %v338 = vmin.f32 %v336, %v337
        %v339 = vrot.slane %v338, 1
        %v340 = vmin.f32 %v338, %v339
        %v341 = vmin.f32 %v334, %v340
        %342 = vst [vmem:[%s306] sm:$0x1] %v341
        %v343 = vld [vmem:[%s312] sm:$0x1]
        %v344 = vrot.slane %v333, 4
        %v345 = vmax.f32 %v333, %v344
        %v346 = vrot.slane %v345, 2
        %v347 = vmax.f32 %v345, %v346
        %v348 = vrot.slane %v347, 1
        %v349 = vmax.f32 %v347, %v348
        %v350 = vmax.f32 %v343, %v349
        %351 = vst [vmem:[%s312] sm:$0x1] %v350
        %v352 = vld [vmem:[%s281] sm:$0xff]
        %v353 = vld [vmem:[%s318] sm:$0x1]
        %v354 = vrot.slane %v352, 4
        %v355 = vmin.f32 %v352, %v354
        %v356 = vrot.slane %v355, 2
        %v357 = vmin.f32 %v355, %v356
        %v358 = vrot.slane %v357, 1
        %v359 = vmin.f32 %v357, %v358
        %v360 = vmin.f32 %v353, %v359
        %361 = vst [vmem:[%s318] sm:$0x1] %v360
        %v362 = vld [vmem:[%s324] sm:$0x1]
        %v363 = vrot.slane %v352, 4
        %v364 = vmax.f32 %v352, %v363
        %v365 = vrot.slane %v364, 2
        %v366 = vmax.f32 %v364, %v365
        %v367 = vrot.slane %v366, 1
        %v368 = vmax.f32 %v366, %v367
        %v369 = vmax.f32 %v362, %v368
        %370 = vst [vmem:[%s324] sm:$0x1] %v369
        %s371 = sand.u32 %s108, 1
        %s372 = scalar_lea.sflag [#allocation4], %s371
        %s373 = sand.u32 %s108, 1
        %s374 = scalar_lea.vmem [#allocation7], %s373
        %s375 = sand.u32 %s32, 1
        %s376 = scalar_lea.sflag [#allocation9], %s375
        %s377 = sand.u32 %s134, 1
        %s378 = scalar_lea.vmem [#allocation8], %s377
        %s379 = sand.u32 %s32, 1
        %s380 = scalar_lea.sflag [#allocation9], %s379
        %s381 = sand.u32 %s160, 1
        %s382 = scalar_lea.vmem [#allocation10], %s381
        %s383 = sand.u32 %s186, 1
        %s384 = scalar_lea.sflag [#allocation12], %s383
        %s385 = sand.u32 %s186, 1
        %s386 = scalar_lea.vmem [#allocation11], %s385
        // Predicated region
        $region41: #{tpu_custom_call.1} parent=27 // pred_check
          %p387 = pneg %p118
        $region42: #{tpu_custom_call.1} parent=27 // pred_check_branch
          %389 = sbr.rel (%p387) target = $region44
        $region43: #{tpu_custom_call.1} parent=27 // pred_region
          %391 = vsyncadd %s372, 0
          %s392 = scalar_lea.hbm %s2, %s36
          %s394 = sshll.u32 %s374, 4
          %s395 = int_to_ptr.vmem [resolvable:$true] %s394
          %s396 = sshll.u32 %s392, 4
          %s397 = int_to_ptr.hbm [resolvable:$true] %s396
          %399 = dma.vmem_to_hbm [thread:$0]  %s395, 16, %s397, %s372
        $region44: #{tpu_custom_call.1} parent=27 // pred_fallthru
          _
        // Predicated region
        $region45: #{tpu_custom_call.1} parent=27 // pred_check
          %p400 = pneg %p144
        $region46: #{tpu_custom_call.1} parent=27 // pred_check_branch
          %402 = sbr.rel (%p400) target = $region48
        $region47: #{tpu_custom_call.1} parent=27 // pred_region
          %404 = vsyncadd %s376, 0
          %s405 = scalar_lea.hbm %s3, %s36
          %s407 = sshll.u32 %s378, 4
          %s408 = int_to_ptr.vmem [resolvable:$true] %s407
          %s409 = sshll.u32 %s405, 4
          %s410 = int_to_ptr.hbm [resolvable:$true] %s409
          %412 = dma.vmem_to_hbm [thread:$0]  %s408, 16, %s410, %s376
        $region48: #{tpu_custom_call.1} parent=27 // pred_fallthru
          _
        // Predicated region
        $region49: #{tpu_custom_call.1} parent=27 // pred_check
          %p413 = pneg %p170
        $region50: #{tpu_custom_call.1} parent=27 // pred_check_branch
          %415 = sbr.rel (%p413) target = $region52
        $region51: #{tpu_custom_call.1} parent=27 // pred_region
          %417 = vsyncadd %s380, 0
          %s418 = scalar_lea.hbm %s4, %s36
          %s420 = sshll.u32 %s382, 4
          %s421 = int_to_ptr.vmem [resolvable:$true] %s420
          %s422 = sshll.u32 %s418, 4
          %s423 = int_to_ptr.hbm [resolvable:$true] %s422
          %425 = dma.vmem_to_hbm [thread:$0]  %s421, 16, %s423, %s380
        $region52: #{tpu_custom_call.1} parent=27 // pred_fallthru
          _
        // Predicated region
        $region53: #{tpu_custom_call.1} parent=27 // pred_check
          %p426 = pneg %p196
        $region54: #{tpu_custom_call.1} parent=27 // pred_check_branch
          %428 = sbr.rel (%p426) target = $region56
        $region55: #{tpu_custom_call.1} parent=27 // pred_region
          %430 = vsyncadd %s384, 0
          %s431 = scalar_lea.hbm %s5, %s36
          %s433 = sshll.u32 %s386, 4
          %s434 = int_to_ptr.vmem [resolvable:$true] %s433
          %s435 = sshll.u32 %s431, 4
          %s436 = int_to_ptr.hbm [resolvable:$true] %s435
          %438 = dma.vmem_to_hbm [thread:$0]  %s434, 16, %s436, %s384
        $region56: #{tpu_custom_call.1} parent=27 // pred_fallthru
          _
      $region28: #{tpu_custom_call.1} parent=5 // pred_fallthru
        _
      %p439 = scmp.le.s32.totalorder 2, %s27
      // Predicated region
      $region57: #{tpu_custom_call.1} parent=5 // pred_check
        %p440 = pneg %p439
      $region58: #{tpu_custom_call.1} parent=5 // pred_check_branch
        %442 = sbr.rel (%p440) target = $region60
      $region59: #{tpu_custom_call.1} parent=5 // pred_region
        %s443 = ssub.s32 %s27, 2
        // Predicated region
        $region61: #{tpu_custom_call.1} parent=59 // pred_check
          %p444 = pneg %p124
        $region62: #{tpu_custom_call.1} parent=59 // pred_check_branch
          %446 = sbr.rel (%p444) target = $region64
        $region63: #{tpu_custom_call.1} parent=59 // pred_region
          %s447 = sand.u32 %s109, 1
          %s448 = scalar_lea.sflag [#allocation4], %s447
          %s449 = sand.u32 %s109, 1
          %s450 = scalar_lea.vmem [#allocation7], %s449
          %452 = dma.done %s448, 16
        $region64: #{tpu_custom_call.1} parent=59 // pred_fallthru
          _
        // Predicated region
        $region65: #{tpu_custom_call.1} parent=59 // pred_check
          %p453 = pneg %p150
        $region66: #{tpu_custom_call.1} parent=59 // pred_check_branch
          %455 = sbr.rel (%p453) target = $region68
        $region67: #{tpu_custom_call.1} parent=59 // pred_region
          %s456 = sand.u32 %s33, 1
          %s457 = scalar_lea.sflag [#allocation9], %s456
          %s458 = sand.u32 %s135, 1
          %s459 = scalar_lea.vmem [#allocation8], %s458
          %461 = dma.done %s457, 16
        $region68: #{tpu_custom_call.1} parent=59 // pred_fallthru
          _
        // Predicated region
        $region69: #{tpu_custom_call.1} parent=59 // pred_check
          %p462 = pneg %p176
        $region70: #{tpu_custom_call.1} parent=59 // pred_check_branch
          %464 = sbr.rel (%p462) target = $region72
        $region71: #{tpu_custom_call.1} parent=59 // pred_region
          %s465 = sand.u32 %s33, 1
          %s466 = scalar_lea.sflag [#allocation9], %s465
          %s467 = sand.u32 %s161, 1
          %s468 = scalar_lea.vmem [#allocation10], %s467
          %470 = dma.done %s466, 16
        $region72: #{tpu_custom_call.1} parent=59 // pred_fallthru
          _
        // Predicated region
        $region73: #{tpu_custom_call.1} parent=59 // pred_check
          %p471 = pneg %p202
        $region74: #{tpu_custom_call.1} parent=59 // pred_check_branch
          %473 = sbr.rel (%p471) target = $region76
        $region75: #{tpu_custom_call.1} parent=59 // pred_region
          %s474 = sand.u32 %s187, 1
          %s475 = scalar_lea.sflag [#allocation12], %s474
          %s476 = sand.u32 %s187, 1
          %s477 = scalar_lea.vmem [#allocation11], %s476
          %479 = dma.done %s475, 16
        $region76: #{tpu_custom_call.1} parent=59 // pred_fallthru
          _
      $region60: #{tpu_custom_call.1} parent=5 // pred_fallthru
        _
    $region6: #{tpu_custom_call.1} parent=1 // loop_footer
      %s31 = sadd.s32 1, %s27
    $region7: #{tpu_custom_call.1} parent=1 // loop_footer_branch
      %26 = sbr.rel target = $region3
    $region8: #{tpu_custom_call.1} parent=1 // loop_exit
      _
    %480 = vsyncpa [#allocation3], 1
    %s481 = scalar_lea.sflag [#allocation3], 1
    %482 = vsyncpa %s481, 1
    %483 = vsyncpa [#allocation6], 1
    %s484 = scalar_lea.sflag [#allocation6], 1
    %485 = vsyncpa %s484, 1
    %486 = vsyncpa [#allocation4], 1
    %s487 = scalar_lea.sflag [#allocation4], 1
    %488 = vsyncpa %s487, 1
    %489 = vsyncpa [#allocation9], 1
    %s490 = scalar_lea.sflag [#allocation9], 1
    %491 = vsyncpa %s490, 1
    %492 = vsyncpa [#allocation12], 1
    %s493 = scalar_lea.sflag [#allocation12], 1
    %494 = vsyncpa %s493, 1

</llo_original>
